<compile_context>
chip_gen: v6e
topology: v6e:2x2x1
jax: 0.10.0
libtpu: 0.0.40
codegen_flags: <defaults>
</compile_context>

<pallas_src>
import functools

import jax
import jax.numpy as jnp
from jax.experimental import pallas as pl
from jax.experimental.pallas import tpu as pltpu


def _label_smoothing_kernel(x_ref, t_ref, out_ref, *, confidence, smoothing,
                            inv_c, n_rows):
    """One grid step = one block of rows. Writes the block's partial loss sum."""
    bn = x_ref.shape[0]
    x = x_ref[...].astype(jnp.float32)                          # (bn, C)

    # Max-shifted logsumexp over the lane (class) dim.
    m = jnp.max(x, axis=-1, keepdims=True)                      # (bn, 1)
    s = jnp.sum(jnp.exp(x - m), axis=-1, keepdims=True)         # (bn, 1)
    lse = m + jnp.log(s)                                        # (bn, 1)

    # x at the target class: (1, C) lane iota broadcast-compared vs targets.
    cls_ids = jax.lax.broadcasted_iota(jnp.int32, (1, x.shape[1]), 1)  # (1, C)
    tgt = t_ref[...]                                             # (bn, 1) int32
    x_t = jnp.sum(jnp.where(cls_ids == tgt, x, 0.0),
                  axis=-1, keepdims=True)                        # (bn, 1)

    # loss_row = lse - conf*x_t - smooth*mean(x)   (conf + smooth == 1)
    loss = lse - confidence * x_t                                # (bn, 1)
    if smoothing != 0.0:  # static Python branch: no smoothing work when 0
        mean_x = jnp.sum(x, axis=-1, keepdims=True) * inv_c
        loss = loss - smoothing * mean_x

    # Tail mask: zero contributions from rows past N in the last (partial) block.
    row0 = pl.program_id(0) * bn
    row_ids = jax.lax.broadcasted_iota(jnp.int32, (bn, 1), 0) + row0
    loss = jnp.where(row_ids < n_rows, loss, 0.0)

    # Per-block partial sum, written as a lane-dense (1, 1, 128) slab.
    out_ref[...] = jnp.broadcast_to(jnp.sum(loss), out_ref.shape).astype(
        jnp.float32)


def _pick_block_rows(n, c, x_itemsize, tile_budget_bytes, max_rows=2048):
    """Largest multiple-of-8 row block that fits the budget, with >=2 blocks."""
    if n <= 8:
        return n  # single block equal to the full (tiny) row extent
    # Per-row VMEM cost: double-buffered input tile + ~4 f32 (bn, C) temps
    # (x cast to f32, x - m, exp(...), one-hot select result) + small extras.
    bytes_per_row = c * (2 * x_itemsize + 4 * 4) + 64
    cap = max(8, tile_budget_bytes // bytes_per_row)
    cap = min(cap, max_rows)
    # Keep >= 2 blocks so the "parallel" grid axis can shard across v7x's two
    # TensorCores and the pipeline has something to overlap.
    half = -(-n // 2)
    half = -(-half // 8) * 8
    cap = min(cap, half)
    return max(8, (cap // 8) * 8)


def label_smoothing_loss(x, target, *, smoothing=0.0, block_rows=None):
    """x: [N, C] float logits; target: [N] int class ids. Returns scalar f32."""
    n, c = x.shape
    x_itemsize = jnp.dtype(x.dtype).itemsize

    # Explicit VMEM limit from the actual chip generation (fallback: v7x 64MiB).
    try:
        phys_vmem = int(pltpu.get_tpu_info().vmem_capacity_bytes)
    except Exception:
        phys_vmem = 64 * 1024 * 1024
    vmem_limit = min(phys_vmem * 3 // 4, 96 * 1024 * 1024)
    tile_budget = vmem_limit // 2  # headroom for pipeline bookkeeping/scratch

    if block_rows is None:
        block_rows = _pick_block_rows(n, c, x_itemsize, tile_budget)
    assert block_rows == n or block_rows % 8 == 0, (
        "block_rows must be a multiple of 8 (or equal to N)")
    num_blocks = -(-n // block_rows)  # cdiv; tail rows are masked in-kernel

    target2d = target.astype(jnp.int32).reshape(n, 1)

    kernel = functools.partial(
        _label_smoothing_kernel,
        confidence=1.0 - float(smoothing),
        smoothing=float(smoothing),
        inv_c=1.0 / float(c),
        n_rows=n,
    )

    cost = pl.CostEstimate(
        flops=7 * n * c,
        transcendentals=n * c + n,
        bytes_accessed=n * c * x_itemsize + n * 4 + num_blocks * 128 * 4,
    )

    partial_sums = pl.pallas_call(
        kernel,
        out_shape=jax.ShapeDtypeStruct((num_blocks, 1, 128), jnp.float32),
        grid_spec=pltpu.PrefetchScalarGridSpec(
            num_scalar_prefetch=0,
            grid=(num_blocks,),
            in_specs=[
                pl.BlockSpec((block_rows, c), lambda i: (i, 0)),
                pl.BlockSpec((block_rows, 1), lambda i: (i, 0)),
            ],
            out_specs=pl.BlockSpec((1, 1, 128), lambda i: (i, 0, 0)),
        ),
        compiler_params=pltpu.CompilerParams(
            dimension_semantics=("parallel",),
            vmem_limit_bytes=vmem_limit,
        ),
        cost_estimate=cost,
    )(x, target2d)

    # Batch mean hoisted out of the kernel; only num_blocks values to reduce.
    return jnp.sum(partial_sums[:, 0, 0]) * (1.0 / float(n))


def _reference(x, target, smoothing):
    logprobs = jax.nn.log_softmax(x.astype(jnp.float32), axis=-1)
    nll = -jnp.take_along_axis(logprobs, target[:, None], axis=-1)[:, 0]
    smooth = -jnp.mean(logprobs, axis=-1)
    return jnp.mean((1.0 - smoothing) * nll + smoothing * smooth)


if __name__ == "__main__":
    key = jax.random.PRNGKey(0)
    kx, kt = jax.random.split(key)

    # Case 1: small f32 demo (auto block selection -> 2 blocks of 8 rows).
    N, C = 16, 128
    smoothing = 0.1
    x = jax.random.normal(kx, (N, C), dtype=jnp.float32)
    target = jax.random.randint(kt, (N,), 0, C, dtype=jnp.int32)
    ref = _reference(x, target, smoothing)
    loss = jax.block_until_ready(label_smoothing_loss(x, target,
                                                      smoothing=smoothing))
    assert jnp.allclose(loss, ref, atol=1e-5, rtol=1e-5), (loss, ref)

    # Case 2: awkward N (tail-masked last block) + bf16 bandwidth path.
    N2 = 20
    x2 = jax.random.normal(kx, (N2, C), dtype=jnp.bfloat16)
    t2 = jax.random.randint(kt, (N2,), 0, C, dtype=jnp.int32)
    ref2 = _reference(x2, t2, smoothing)
    loss2 = jax.block_until_ready(
        label_smoothing_loss(x2, t2, smoothing=smoothing, block_rows=8))
    assert jnp.allclose(loss2, ref2, atol=1e-4, rtol=1e-4), (loss2, ref2)

    # Case 3: smoothing == 0 (static branch skips the mean(x) term entirely).
    ref3 = _reference(x, target, 0.0)
    loss3 = jax.block_until_ready(label_smoothing_loss(x, target,
                                                       smoothing=0.0))
    assert jnp.allclose(loss3, ref3, atol=1e-5, rtol=1e-5), (loss3, ref3)

    print("KERNEL_OK")
</pallas_src>

<mosaic_0001>
module attributes {stable_mosaic.version = 11 : i64} {
  func.func @_label_smoothing_kernel(%arg0: i32, %arg1: memref<8x128xf32, #tpu.memory_space<vmem>>, %arg2: memref<8x1xi32, #tpu.memory_space<vmem>>, %arg3: memref<1x1x128xf32, #tpu.memory_space<vmem>>) attributes {dimension_semantics = [#tpu.dimension_semantics<parallel>], iteration_bounds = array<i64: 2>, scalar_prefetch = 0 : i64, scratch_operands = 0 : i64, tpu.core_type = #tpu.core_type<tc>, window_params = [{transform_indices = @transform_0, window_bounds = array<i64: 8, 128>}, {transform_indices = @transform_1, window_bounds = array<i64: 8, 1>}, {transform_indices = @transform_2, window_bounds = array<i64: 1, 1, 128>}]} {
    %c0 = arith.constant 0 : index
    %c0_0 = arith.constant 0 : index
    %0 = vector.load %arg1[%c0, %c0_0] : memref<8x128xf32, #tpu.memory_space<vmem>>, vector<8x128xf32>
    %cst = arith.constant dense<0xFF800000> : vector<8xf32>
    %1 = vector.multi_reduction <maximumf>, %0, %cst [1] : vector<8x128xf32> to vector<8xf32>
    %2 = vector.shape_cast %1 : vector<8xf32> to vector<8x1xf32>
    %3 = vector.broadcast %2 : vector<8x1xf32> to vector<8x128xf32>
    %4 = arith.subf %0, %3 : vector<8x128xf32>
    %5 = math.exp %4 : vector<8x128xf32>
    %cst_1 = arith.constant dense<0.000000e+00> : vector<8xf32>
    %6 = vector.multi_reduction <add>, %5, %cst_1 [1] : vector<8x128xf32> to vector<8xf32>
    %7 = vector.shape_cast %6 : vector<8xf32> to vector<8x1xf32>
    %8 = math.log %7 : vector<8x1xf32>
    %9 = arith.addf %2, %8 : vector<8x1xf32>
    %10 = tpu.iota {dimensions = array<i32: 1>} : vector<1x128xi32>
    %c0_2 = arith.constant 0 : index
    %c0_3 = arith.constant 0 : index
    %11 = vector.load %arg2[%c0_2, %c0_3] : memref<8x1xi32, #tpu.memory_space<vmem>>, vector<8x1xi32>
    %12 = vector.broadcast %10 : vector<1x128xi32> to vector<8x128xi32>
    %13 = vector.broadcast %11 : vector<8x1xi32> to vector<8x128xi32>
    %14 = arith.cmpi eq, %12, %13 : vector<8x128xi32>
    %cst_4 = arith.constant 0.000000e+00 : f32
    %15 = vector.broadcast %cst_4 : f32 to vector<8x128xf32>
    %16 = arith.select %14, %0, %15 : vector<8x128xi1>, vector<8x128xf32>
    %cst_5 = arith.constant dense<0.000000e+00> : vector<8xf32>
    %17 = vector.multi_reduction <add>, %16, %cst_5 [1] : vector<8x128xf32> to vector<8xf32>
    %18 = vector.shape_cast %17 : vector<8xf32> to vector<8x1xf32>
    %cst_6 = arith.constant 0.899999976 : f32
    %19 = vector.broadcast %cst_6 : f32 to vector<8x1xf32>
    %20 = arith.mulf %19, %18 : vector<8x1xf32>
    %21 = arith.subf %9, %20 : vector<8x1xf32>
    %cst_7 = arith.constant dense<0.000000e+00> : vector<8xf32>
    %22 = vector.multi_reduction <add>, %0, %cst_7 [1] : vector<8x128xf32> to vector<8xf32>
    %23 = vector.shape_cast %22 : vector<8xf32> to vector<8x1xf32>
    %cst_8 = arith.constant 7.812500e-03 : f32
    %24 = vector.broadcast %cst_8 : f32 to vector<8x1xf32>
    %25 = arith.mulf %23, %24 : vector<8x1xf32>
    %cst_9 = arith.constant 1.000000e-01 : f32
    %26 = vector.broadcast %cst_9 : f32 to vector<8x1xf32>
    %27 = arith.mulf %26, %25 : vector<8x1xf32>
    %28 = arith.subf %21, %27 : vector<8x1xf32>
    %c8_i32 = arith.constant 8 : i32
    %29 = arith.muli %arg0, %c8_i32 : i32
    %30 = tpu.iota {dimensions = array<i32: 0>} : vector<8x1xi32>
    %31 = vector.broadcast %29 : i32 to vector<8x1xi32>
    %32 = arith.addi %30, %31 : vector<8x1xi32>
    %c16_i32 = arith.constant 16 : i32
    %33 = vector.broadcast %c16_i32 : i32 to vector<8x1xi32>
    %34 = arith.cmpi slt, %32, %33 : vector<8x1xi32>
    %cst_10 = arith.constant 0.000000e+00 : f32
    %35 = vector.broadcast %cst_10 : f32 to vector<8x1xf32>
    %36 = arith.select %34, %28, %35 : vector<8x1xi1>, vector<8x1xf32>
    %37 = vector.shape_cast %36 : vector<8x1xf32> to vector<1x8x1xf32>
    %cst_11 = arith.constant dense<0.000000e+00> : vector<1xf32>
    %38 = vector.multi_reduction <add>, %37, %cst_11 [1, 2] : vector<1x8x1xf32> to vector<1xf32>
    %39 = vector.shape_cast %38 : vector<1xf32> to vector<1x1x1xf32>
    %40 = vector.extract %39[0, 0, 0] : f32 from vector<1x1x1xf32>
    %41 = vector.broadcast %40 : f32 to vector<1x1x128xf32>
    %c0_12 = arith.constant 0 : index
    %c0_13 = arith.constant 0 : index
    %c0_14 = arith.constant 0 : index
    %42 = vector.load %arg3[%c0_12, %c0_13, %c0_14] : memref<1x1x128xf32, #tpu.memory_space<vmem>>, vector<1x1x128xf32>
    tpu.vector_store %arg3[%c0_12, %c0_13, %c0_14], %41 {strides = array<i32>} : memref<1x1x128xf32, #tpu.memory_space<vmem>>, vector<1x1x128xf32>,
    return
  }
  func.func @transform_0(%arg0: i32) -> (i32, i32) {
    %c0_i32 = arith.constant 0 : i32
    %c0_i32_0 = arith.constant 0 : i32
    return %arg0, %c0_i32 : i32, i32
  }
  func.func @transform_1(%arg0: i32) -> (i32, i32) {
    %c0_i32 = arith.constant 0 : i32
    %c0_i32_0 = arith.constant 0 : i32
    return %arg0, %c0_i32 : i32, i32
  }
  func.func @transform_2(%arg0: i32) -> (i32, i32, i32) {
    %c0_i32 = arith.constant 0 : i32
    %c0_i32_0 = arith.constant 0 : i32
    %c0_i32_1 = arith.constant 0 : i32
    return %arg0, %c0_i32, %c0_i32_0 : i32, i32, i32
  }
}

</mosaic_0001>

<llo_original>
// kernel: tpu_custom_call.1
$region0: #{tpu_custom_call.1}
  #allocation0 [shape = 'u32[]', space=smem, size = 0x4, offset = 0x4, fixed_abs, tag = 'smem constant byte address 0x4 - core index']
  #allocation1 [shape = 'u32[144,128]{1,0:T(1,128)}', space=vmem, size = 0x12000, scoped, tag = 'internal scratch']
  %s0 = inlined_call_operand.vmem [shape: f32[16,128], index: 0, kind: input, shape index: {}]
  %s1 = inlined_call_operand.vmem [shape: s32[16,1], index: 1, kind: input, shape index: {}]
  %s2 = inlined_call_operand.hbm [shape: f32[2,1,128], index: 2, kind: output, shape index: {}]
  %s3 = sld [smem:[#allocation0]]
  $region41: #{tpu_custom_call.1} parent=0
    _
  %s5 = ssub.s32 1, %s3
  %s6 = scalar_select 0, %s5, %s3
  $region1: #{tpu_custom_call.1} parent=0
    #allocation2 [shape = 'u8[1024]{0}', space=vmem, size = 0x400, scoped, tag = 'output window, operand 0']
    #allocation3 [shape = 's32[2]{0}', space=sflag, size = 0x8, scoped, tag = 'scoped memory for tpu_custom_call.1']
    %7 = vsyncpa [#allocation3], 0
    %s8 = scalar_lea.sflag [#allocation3], 1
    %9 = vsyncpa %s8, 0
    loop: start=0, step=1, limit=4
    $region2: #{tpu_custom_call.1} parent=1 // loop_pre_header
      _
    $region3: #{tpu_custom_call.1} parent=1 // loop_header
      %s11 = sphi 0, %s15
      %p12 = scmp.ge.s32.totalorder %s11, 4
      %s21 = sphi 0, %s23
      %s24 = sphi 0, %s21
      %s25 = sphi 0, %s24
      %s41 = sphi 0, %s25
      %s47 = sphi 0, %s49
      %s50 = sphi 0, %s47
      %s51 = sphi 0, %s50
      %s67 = sphi 0, %s51
      %s73 = sphi 0, %s75
      %s76 = sphi 0, %s73
      %s77 = sphi 0, %s76
      %s93 = sphi 0, %s77
    $region4: #{tpu_custom_call.1} parent=1 // loop_header_branch
      %14 = sbr.rel (%p12) target = $region8
    $region5: #{tpu_custom_call.1} parent=1 // loop_body
      %s16 = ssub.s32 %s11, 1
      %s17 = ssub.s32 %s11, 2
      %s18 = sadd.s32 %s11, 1
      %s19 = ssub.s32 %s11, %s18
      %p20 = scmp.eq.s32.totalorder %s19, 0
      %s22 = sadd.s32 %s21, 1
      %s23 = scalar_select %p20, %s21, %s22
      %p26 = pneg %p20
      %p27 = scmp.eq.s32.totalorder %s11, 1
      %p28 = por %p26, %p27
      %p29 = scmp.ne.s32.totalorder %s21, %s24
      %p30 = scmp.eq.s32.totalorder %s11, 0
      %p31 = por %p29, %p30
      %p32 = scmp.ne.s32.totalorder %s21, %s24
      %p33 = scmp.eq.s32.totalorder %s16, 1
      %p34 = por %p32, %p33
      %p35 = scmp.ne.s32.totalorder %s24, %s25
      %p36 = scmp.eq.s32.totalorder %s16, 0
      %p37 = por %p35, %p36
      %p38 = scmp.ne.s32.totalorder %s24, %s25
      %p39 = scmp.eq.s32.totalorder %s17, 1
      %p40 = por %p38, %p39
      %p42 = scmp.ne.s32.totalorder %s25, %s41
      %p43 = scmp.eq.s32.totalorder %s17, 0
      %p44 = por %p42, %p43
      %s45 = ssub.s32 %s11, %s18
      %p46 = scmp.eq.s32.totalorder %s45, 0
      %s48 = sadd.s32 %s47, 1
      %s49 = scalar_select %p46, %s47, %s48
      %p52 = pneg %p46
      %p53 = scmp.eq.s32.totalorder %s11, 1
      %p54 = por %p52, %p53
      %p55 = scmp.ne.s32.totalorder %s47, %s50
      %p56 = scmp.eq.s32.totalorder %s11, 0
      %p57 = por %p55, %p56
      %p58 = scmp.ne.s32.totalorder %s47, %s50
      %p59 = scmp.eq.s32.totalorder %s16, 1
      %p60 = por %p58, %p59
      %p61 = scmp.ne.s32.totalorder %s50, %s51
      %p62 = scmp.eq.s32.totalorder %s16, 0
      %p63 = por %p61, %p62
      %p64 = scmp.ne.s32.totalorder %s50, %s51
      %p65 = scmp.eq.s32.totalorder %s17, 1
      %p66 = por %p64, %p65
      %p68 = scmp.ne.s32.totalorder %s51, %s67
      %p69 = scmp.eq.s32.totalorder %s17, 0
      %p70 = por %p68, %p69
      %s71 = ssub.s32 %s11, %s18
      %p72 = scmp.eq.s32.totalorder %s71, 0
      %s74 = sadd.s32 %s73, 1
      %s75 = scalar_select %p72, %s73, %s74
      %p78 = pneg %p72
      %p79 = scmp.eq.s32.totalorder %s11, 1
      %p80 = por %p78, %p79
      %p81 = scmp.ne.s32.totalorder %s73, %s76
      %p82 = scmp.eq.s32.totalorder %s11, 0
      %p83 = por %p81, %p82
      %p84 = scmp.ne.s32.totalorder %s73, %s76
      %p85 = scmp.eq.s32.totalorder %s16, 1
      %p86 = por %p84, %p85
      %p87 = scmp.ne.s32.totalorder %s76, %s77
      %p88 = scmp.eq.s32.totalorder %s16, 0
      %p89 = por %p87, %p88
      %p90 = scmp.ne.s32.totalorder %s76, %s77
      %p91 = scmp.eq.s32.totalorder %s17, 1
      %p92 = por %p90, %p91
      %p94 = scmp.ne.s32.totalorder %s77, %s93
      %p95 = scmp.eq.s32.totalorder %s17, 0
      %p96 = por %p94, %p95
      %p97 = scmp.le.s32.totalorder 1, %s11
      %p98 = scmp.lt.s32.totalorder %s11, 3
      %p99 = pnand %p97, %p98
      %p100 = pneg %p99
      // Predicated region
      $region9: #{tpu_custom_call.1} parent=5 // pred_check
        _
      $region10: #{tpu_custom_call.1} parent=5 // pred_check_branch
        %102 = sbr.rel (%p99) target = $region12
      $region11: #{tpu_custom_call.1} parent=5 // pred_region
        %s103 = ssub.s32 %s11, 1
      $region12: #{tpu_custom_call.1} parent=5 // pred_fallthru
        _
      %p104 = scmp.lt.s32.totalorder %s11, 2
      // Predicated region
      $region13: #{tpu_custom_call.1} parent=5 // pred_check
        %p105 = pneg %p104
      $region14: #{tpu_custom_call.1} parent=5 // pred_check_branch
        %107 = sbr.rel (%p105) target = $region16
      $region15: #{tpu_custom_call.1} parent=5 // pred_region
        // Predicated region
        $region17: #{tpu_custom_call.1} parent=15 // pred_check
          %p108 = pneg %p31
        $region18: #{tpu_custom_call.1} parent=15 // pred_check_branch
          %110 = sbr.rel (%p108) target = $region20
        $region19: #{tpu_custom_call.1} parent=15 // pred_region
          %p111 = scmp.lt.s32.totalorder %s11, 1
          %s112 = scalar_select %p111, %s11, 1
          %s113 = smul.addr %s112, 8
          %s114 = scalar_lea.vmem %s0, %s113
        $region20: #{tpu_custom_call.1} parent=15 // pred_fallthru
          _
        // Predicated region
        $region21: #{tpu_custom_call.1} parent=15 // pred_check
          %p115 = pneg %p57
        $region22: #{tpu_custom_call.1} parent=15 // pred_check_branch
          %117 = sbr.rel (%p115) target = $region24
        $region23: #{tpu_custom_call.1} parent=15 // pred_region
          %p118 = scmp.lt.s32.totalorder %s11, 1
          %s119 = scalar_select %p118, %s11, 1
          %s120 = smul.addr %s119, 8
          %s121 = scalar_lea.vmem %s1, %s120
        $region24: #{tpu_custom_call.1} parent=15 // pred_fallthru
          _
      $region16: #{tpu_custom_call.1} parent=5 // pred_fallthru
        _
      %p122 = scmp.le.s32.totalorder 1, %s11
      %p123 = scmp.lt.s32.totalorder %s11, 3
      %p124 = pnand %p122, %p123
      %p125 = pneg %p124
      // Predicated region
      $region25: #{tpu_custom_call.1} parent=5 // pred_check
        _
      $region26: #{tpu_custom_call.1} parent=5 // pred_check_branch
        %127 = sbr.rel (%p124) target = $region28
      $region27: #{tpu_custom_call.1} parent=5 // pred_region
        %s128 = ssub.s32 %s11, 1
        %p129 = scmp.lt.s32.totalorder %s16, 1
        %s130 = scalar_select %p129, %s16, 1
        %s131 = smul.addr %s130, 8
        %s132 = scalar_lea.vmem %s0, %s131
        %p133 = pneg %p37
        %p134 = pneg %p34
        %p135 = scmp.lt.s32.totalorder %s16, 1
        %s136 = scalar_select %p135, %s16, 1
        %s137 = smul.addr %s136, 8
        %s138 = scalar_lea.vmem %s1, %s137
        %p139 = pneg %p63
        %p140 = pneg %p60
        %p141 = pneg %p89
        %p142 = pneg %p86
        %s143 = sand.u32 %s76, 1
        %s144 = scalar_lea.sflag [#allocation3], %s143
        %s145 = sand.u32 %s76, 1
        %s146 = scalar_lea.vmem [#allocation2], %s145
        %p147 = scmp.lt.s32.totalorder %s16, 1
        %s148 = scalar_select %p147, %s16, 1
        %s149 = smul.addr %s148, 8
        %s150 = scalar_lea.vmem %s0, %s149
        %p151 = scmp.lt.s32.totalorder %s16, 1
        %s152 = scalar_select %p151, %s16, 1
        %s153 = smul.addr %s152, 8
        %s154 = scalar_lea.vmem %s1, %s153
        %v155 = vld [vmem:[%s150] sm:$0xff]
        %156 = vmax.xlane.f32.xlu0 %v155
        %v157 = vpop.xlane.xlu0 %156
        %v158 = vsub.f32 %v155, %v157
        %v159 = vmul.f32 %v158, 1.442695
        %v160 = vpow.pop %v159
        %161 = vadd.xlane.f32.xlu0 %v160
        %v162 = vpop.xlane.xlu0 %161
        %v163 = vlog2.pop %v162
        %v164 = vmul.f32 %v163, 0.6931472
        %v165 = vadd.f32 %v157, %v164
        %v166 = vlaneseq
        %v167 = vand.u32 %v166, 127
        %v168 = vld [vmem:[%s154] sm:$0xff]
        %169 = vset.pattern.permute.xlu0 0
        %170 = vperm.xlu0 %169, %v168
        %v171 = vpop.permute.xlu0 %170
        %vm172 = vcmp.eq.s32.totalorder %v167, %v171
        %v173 = vsel %vm172, %v155, 0.0
        %174 = vadd.xlane.f32.xlu0 %v173
        %v175 = vpop.xlane.xlu0 %174
        %v176 = vmul.f32 %v175, 0.9
        %v177 = vsub.f32 %v165, %v176
        %178 = vadd.xlane.f32.xlu0 %v155
        %v179 = vpop.xlane.xlu0 %178
        %v180 = vmul.f32 %v179, 0.0078125
        %v181 = vmul.f32 %v180, 0.1
        %v182 = vsub.f32 %v177, %v181
        %s183 = smul.u32 %s16, 8
        %v184 = vlaneseq
        %v185 = vshrl.u32 %v184, 7
        %v186 = vstv %s183
        %v187 = vadd.s32 %v185, %v186
        %vm188 = vcmp.lt.s32.totalorder %v187, 16
        %v189 = vsel %vm188, %v182, 0.0
        %vm190 = vcmask 7168
        %v191 = vsel %vm190, %v189, 0.0
        %192 = vadd.xlane.f32.xlu0 %v191
        %v193 = vpop.xlane.xlu0 %192
        %v194 = vrot.slane %v193, 4
        %v195 = vadd.f32 %v193, %v194
        %v196 = vrot.slane %v195, 2
        %v197 = vadd.f32 %v195, %v196
        %v198 = vrot.slane %v197, 1
        %v199 = vadd.f32 %v197, %v198
        %s200 = vtos %v199
        %v201 = vstv %s200
        %202 = vst [vmem:[%s146] sm:$0x1] %v201
        %s203 = sand.u32 %s76, 1
        %s204 = scalar_lea.sflag [#allocation3], %s203
        %s205 = sand.u32 %s76, 1
        %s206 = scalar_lea.vmem [#allocation2], %s205
        // Predicated region
        $region29: #{tpu_custom_call.1} parent=27 // pred_check
          %p207 = pneg %p86
        $region30: #{tpu_custom_call.1} parent=27 // pred_check_branch
          %209 = sbr.rel (%p207) target = $region32
        $region31: #{tpu_custom_call.1} parent=27 // pred_region
          %s211 = ssub.s32 16, 16
          %212 = vsyncadd %s204, %s211
          %s213 = smul.addr %s16, 16
          %s214 = scalar_lea.hbm %s2, %s213
          %s216 = sshll.u32 %s206, 4
          %s217 = int_to_ptr.vmem [resolvable:$true] %s216
          %219 = dma.vmem_to_hbm [thread:$0]  %s217, 16, %s214, %s204
        $region32: #{tpu_custom_call.1} parent=27 // pred_fallthru
          _
      $region28: #{tpu_custom_call.1} parent=5 // pred_fallthru
        _
      %p220 = scmp.le.s32.totalorder 2, %s11
      // Predicated region
      $region33: #{tpu_custom_call.1} parent=5 // pred_check
        %p221 = pneg %p220
      $region34: #{tpu_custom_call.1} parent=5 // pred_check_branch
        %223 = sbr.rel (%p221) target = $region36
      $region35: #{tpu_custom_call.1} parent=5 // pred_region
        %s224 = ssub.s32 %s11, 2
        // Predicated region
        $region37: #{tpu_custom_call.1} parent=35 // pred_check
          %p225 = pneg %p92
        $region38: #{tpu_custom_call.1} parent=35 // pred_check_branch
          %227 = sbr.rel (%p225) target = $region40
        $region39: #{tpu_custom_call.1} parent=35 // pred_region
          %s228 = sand.u32 %s77, 1
          %s229 = scalar_lea.sflag [#allocation3], %s228
          %s230 = sand.u32 %s77, 1
          %s231 = scalar_lea.vmem [#allocation2], %s230
          %232 = dma.done %s229, 16
        $region40: #{tpu_custom_call.1} parent=35 // pred_fallthru
          _
      $region36: #{tpu_custom_call.1} parent=5 // pred_fallthru
        _
    $region6: #{tpu_custom_call.1} parent=1 // loop_footer
      %s15 = sadd.s32 1, %s11
    $region7: #{tpu_custom_call.1} parent=1 // loop_footer_branch
      %10 = sbr.rel target = $region3
    $region8: #{tpu_custom_call.1} parent=1 // loop_exit
      _
    %233 = vsyncpa [#allocation3], 1
    %s234 = scalar_lea.sflag [#allocation3], 1
    %235 = vsyncpa %s234, 1

</llo_original>
